<compile_context>
chip_gen: v6e
topology: v6e:2x2x1
jax: 0.10.0
libtpu: 0.0.40
codegen_flags: <defaults>
</compile_context>

<pallas_src>
import functools

import jax
import jax.numpy as jnp
from jax.experimental import pallas as pl
from jax.experimental.pallas import tpu as pltpu


def _round_up(v, m):
    return ((v + m - 1) // m) * m


def _pick_row_tile(n_pad, preferred=512):
    # Second-minor dim of the A_hat block: must divide n_pad and be a
    # multiple of 16 (bf16 sublane packing).  n_pad is a multiple of 128.
    t = min(n_pad, preferred)
    while n_pad % t != 0:
        t //= 2
    return max(t, 16)


def _pick_k_tile(n_pad, preferred=2048):
    # Minor dim of the A_hat block: must divide n_pad, multiple of 128.
    t = min(n_pad, preferred)
    while n_pad % t != 0:
        t //= 2
    return max(t, 128)


def _gcn_kernel(a_ref, x_ref, wt_ref, b_ref, o_ref, acc_ref, *, tile_k):
    """One (row-tile i, source-tile k) step of out = (A_hat @ X) @ W^T + b."""
    k = pl.program_id(1)

    @pl.when(k == 0)
    def _init():
        acc_ref[...] = jnp.zeros_like(acc_ref)

    # X is resident in VMEM for the whole kernel (fetched once); slice the
    # current k-slab in place instead of re-DMAing it per row tile.
    start = pl.multiple_of(k * tile_k, tile_k)
    x_blk = x_ref[pl.ds(start, tile_k), :]

    # Neighborhood aggregation: bf16 x bf16 -> f32 accumulate on the MXU.
    acc_ref[...] += jnp.dot(a_ref[...], x_blk,
                            preferred_element_type=jnp.float32)

    @pl.when(k == pl.num_programs(1) - 1)
    def _finalize():
        # f32 epilogue: tiny (tile_n, C_in) @ (C_in, C_pad) projection + bias.
        out = jnp.dot(acc_ref[...], wt_ref[...],
                      preferred_element_type=jnp.float32) + b_ref[...]
        o_ref[...] = out.astype(o_ref.dtype)


def gcn_forward_pallas(a_hat_bf16, x_bf16, w_t_pad, bias_pad, *, c_out=None,
                       tile_n=None, tile_k=None, slice_output=True):
    """out = A_hat @ (X @ W^T) + b, computed in-kernel as (A_hat @ X) @ W^T.

    a_hat_bf16 : (n_pad, n_pad) bf16 normalized adjacency (built ONCE by
                 build_normalized_adjacency; the cast is not per-call).
    x_bf16     : (n_pad, c_in) bf16 node features (rows zero-padded).
    w_t_pad    : (c_in, c_pad) f32, c_pad a multiple of 128.
    bias_pad   : (1, c_pad) f32.
    """
    n_pad, c_in = x_bf16.shape
    c_pad = w_t_pad.shape[1]
    if c_out is None:
        c_out = c_pad

    assert a_hat_bf16.shape == (n_pad, n_pad)
    assert n_pad % 128 == 0, "pad N up to a multiple of 128 in the builder"
    assert c_pad % 128 == 0 and bias_pad.shape == (1, c_pad)

    if tile_n is None:
        tile_n = _pick_row_tile(n_pad)
    if tile_k is None:
        tile_k = _pick_k_tile(n_pad)
    assert n_pad % tile_n == 0 and n_pad % tile_k == 0
    assert tile_n % 16 == 0 and tile_k % 128 == 0

    grid = (n_pad // tile_n, n_pad // tile_k)

    # VMEM budget: double-buffered A tile + resident X + out + acc + W/bias.
    lane = 128
    c_in_l = _round_up(c_in, lane)
    vmem_bytes = (2 * tile_n * tile_k * 2            # A_hat tiles (bf16, x2)
                  + n_pad * c_in_l * 2               # X resident (lane-padded)
                  + 2 * tile_n * c_pad * 4           # out tiles (f32, x2)
                  + tile_n * c_in_l * 4              # f32 accumulator
                  + _round_up(c_in, 8) * c_pad * 4   # W^T
                  + 8 * c_pad * 4)                   # bias
    vmem_limit = min(128 << 20, max(32 << 20, int(vmem_bytes * 3 // 2)))

    cost = pl.CostEstimate(
        flops=2 * n_pad * n_pad * c_in + 2 * n_pad * c_in * c_pad,
        transcendentals=0,
        bytes_accessed=(n_pad * n_pad * 2 + n_pad * c_in_l * 2
                        + c_in * c_pad * 4 + c_pad * 4 + n_pad * c_pad * 4),
    )

    kernel = functools.partial(_gcn_kernel, tile_k=tile_k)

    out_padded = pl.pallas_call(
        kernel,
        out_shape=jax.ShapeDtypeStruct((n_pad, c_pad), jnp.float32),
        grid_spec=pltpu.PrefetchScalarGridSpec(
            num_scalar_prefetch=0,
            grid=grid,
            in_specs=[
                # A_hat (row tile, source tile): the dominant N^2 stream.
                pl.BlockSpec((tile_n, tile_k), lambda i, k: (i, k)),
                # X fully resident: constant index_map -> fetched once, no
                # per-row-tile re-DMA (sliced with pl.ds inside the kernel).
                pl.BlockSpec((n_pad, c_in), lambda i, k: (0, 0)),
                pl.BlockSpec((c_in, c_pad), lambda i, k: (0, 0)),   # W^T
                pl.BlockSpec((1, c_pad), lambda i, k: (0, 0)),      # bias
            ],
            out_specs=pl.BlockSpec((tile_n, c_pad), lambda i, k: (i, 0)),
            scratch_shapes=[pltpu.VMEM((tile_n, c_in), jnp.float32)],
        ),
        compiler_params=pltpu.CompilerParams(
            # Row tiles shard across TensorCores; reduction axis is last.
            dimension_semantics=("parallel", "arbitrary"),
            vmem_limit_bytes=vmem_limit,
        ),
        cost_estimate=cost,
    )(a_hat_bf16, x_bf16, w_t_pad, bias_pad)

    if slice_output:
        return out_padded[:, :c_out]
    return out_padded


def build_normalized_adjacency(edge_index, num_nodes, *, n_pad=None,
                               dtype=jnp.bfloat16):
    """Dense D^{-1/2} (A + I) D^{-1/2}, matching PyG gcn_norm.

    Uses add_remaining_self_loops semantics: a unit self-loop is added only
    for nodes that do not already have one.  Result is lane-padded to
    (n_pad, n_pad) and cast to `dtype` ONCE so the forward path never pays a
    per-call cast over the N^2 array.  One-time setup glue, not the hot path.
    """
    if n_pad is None:
        n_pad = _round_up(num_nodes, 128)
    row, col = edge_index[0], edge_index[1]   # edge: row (source) -> col (target)
    w = jnp.ones(row.shape[0], jnp.float32)

    # add_remaining_self_loops: weight-1 loop only where no self-loop exists.
    is_loop = row == col
    has_loop = jnp.zeros((num_nodes,), jnp.bool_).at[
        jnp.where(is_loop, row, num_nodes)].set(True, mode="drop")
    loop_idx = jnp.arange(num_nodes, dtype=row.dtype)
    loop_w = jnp.where(has_loop, 0.0, 1.0).astype(jnp.float32)

    row = jnp.concatenate([row, loop_idx])
    col = jnp.concatenate([col, loop_idx])
    w = jnp.concatenate([w, loop_w])

    deg = jnp.zeros((num_nodes,), jnp.float32).at[col].add(w)
    dinv = jnp.where(deg > 0, jax.lax.rsqrt(deg), 0.0)
    norm = dinv[row] * w * dinv[col]
    # A_hat[target, source]; duplicate edges accumulate, as in PyG scatter-add.
    a_hat = jnp.zeros((n_pad, n_pad), jnp.float32).at[col, row].add(norm)
    return a_hat.astype(dtype)


def prepare_gcn_params(w, bias):
    """One-time lane-dense packing of GCNConv parameters (hoisted pads)."""
    c_out, c_in = w.shape
    c_pad = _round_up(c_out, 128)
    w_t_pad = jnp.pad(w.T.astype(jnp.float32), ((0, 0), (0, c_pad - c_out)))
    bias_pad = jnp.pad(bias.astype(jnp.float32),
                       (0, c_pad - c_out)).reshape(1, c_pad)
    return w_t_pad, bias_pad, c_out


def prepare_node_features(x, n_pad):
    """One-time row-pad + bf16 cast of node features (hoisted)."""
    n = x.shape[0]
    return jnp.pad(x, ((0, n_pad - n), (0, 0))).astype(jnp.bfloat16)


if __name__ == "__main__":
    key = jax.random.PRNGKey(0)
    k_x, k_src, k_dst, k_w = jax.random.split(key, 4)

    num_nodes = 256
    in_channels = 16
    out_channels = 32
    num_edges = 1024

    # Deterministic synthetic graph + features.
    x = jax.random.normal(k_x, (num_nodes, in_channels), dtype=jnp.float32)
    src = jax.random.randint(k_src, (num_edges,), 0, num_nodes, dtype=jnp.int32)
    dst = jax.random.randint(k_dst, (num_edges,), 0, num_nodes, dtype=jnp.int32)
    edge_index = jnp.stack([src, dst], axis=0)       # (2, E)

    # Deterministic GCNConv params (glorot weight, zero bias).
    limit = (6.0 / (in_channels + out_channels)) ** 0.5
    w = jax.random.uniform(k_w, (out_channels, in_channels),
                           minval=-limit, maxval=limit, dtype=jnp.float32)
    bias = jnp.zeros((out_channels,), jnp.float32)

    # ---- one-time setup (NOT in the per-forward path) ----
    n_pad = _round_up(num_nodes, 128)
    a_hat_f32 = build_normalized_adjacency(edge_index, num_nodes,
                                           n_pad=n_pad, dtype=jnp.float32)
    a_hat_bf16 = a_hat_f32.astype(jnp.bfloat16)      # cast once, reused per call
    x_bf16 = prepare_node_features(x, n_pad)
    w_t_pad, bias_pad, c_out = prepare_gcn_params(w, bias)

    forward = jax.jit(functools.partial(gcn_forward_pallas, c_out=c_out))

    # Default (large-tile) path; at this demo size the grid collapses to (1,1).
    out = jax.block_until_ready(forward(a_hat_bf16, x_bf16, w_t_pad, bias_pad))

    # Small tiles purely to exercise the (parallel row, arbitrary K) grid and
    # the accumulator init/finalize at demo size; real N uses the defaults.
    out_tiled = jax.block_until_ready(
        gcn_forward_pallas(a_hat_bf16, x_bf16, w_t_pad, bias_pad,
                           c_out=c_out, tile_n=128, tile_k=128))

    # References: one with the same bf16 rounding of the streamed operands,
    # one in full f32.
    a_q = a_hat_bf16[:num_nodes, :num_nodes].astype(jnp.float32)
    x_q = x_bf16[:num_nodes].astype(jnp.float32)
    ref_q = a_q @ (x_q @ w.T) + bias[None, :]
    ref_f32 = a_hat_f32[:num_nodes, :num_nodes] @ (x @ w.T) + bias[None, :]

    out = out[:num_nodes]
    out_tiled = out_tiled[:num_nodes]
    assert out.shape == (num_nodes, out_channels)
    assert jnp.allclose(out, ref_q, atol=5e-3, rtol=5e-3), \
        float(jnp.max(jnp.abs(out - ref_q)))
    assert jnp.allclose(out_tiled, ref_q, atol=5e-3, rtol=5e-3), \
        float(jnp.max(jnp.abs(out_tiled - ref_q)))
    assert jnp.allclose(out, ref_f32, atol=5e-2, rtol=5e-2)

    print("KERNEL_OK")
</pallas_src>

<mosaic_0001>
module attributes {stable_mosaic.version = 11 : i64} {
  func.func @_gcn_kernel(%arg0: i32, %arg1: i32, %arg2: memref<256x256xbf16, #tpu.memory_space<vmem>>, %arg3: memref<256x16xbf16, #tpu.memory_space<vmem>>, %arg4: memref<16x128xf32, #tpu.memory_space<vmem>>, %arg5: memref<1x128xf32, #tpu.memory_space<vmem>>, %arg6: memref<256x128xf32, #tpu.memory_space<vmem>>, %arg7: memref<256x16xf32, #tpu.memory_space<vmem>>) attributes {dimension_semantics = [#tpu.dimension_semantics<parallel>, #tpu.dimension_semantics<arbitrary>], iteration_bounds = array<i64: 1, 1>, scalar_prefetch = 0 : i64, scratch_operands = 1 : i64, tpu.core_type = #tpu.core_type<tc>, window_params = [{transform_indices = @transform_0, window_bounds = array<i64: 256, 256>}, {pipeline_mode = #tpu.pipeline_mode<synchronous>, transform_indices = @transform_1, window_bounds = array<i64: 256, 16>}, {pipeline_mode = #tpu.pipeline_mode<synchronous>, transform_indices = @transform_2, window_bounds = array<i64: 16, 128>}, {pipeline_mode = #tpu.pipeline_mode<synchronous>, transform_indices = @transform_3, window_bounds = array<i64: 1, 128>}, {transform_indices = @transform_4, window_bounds = array<i64: 256, 128>}]} {
    %c0_i32 = arith.constant 0 : i32
    %0 = arith.cmpi eq, %arg1, %c0_i32 : i32
    %1 = arith.extui %0 : i1 to i32
    %c0_i32_0 = arith.constant 0 : i32
    %2 = arith.cmpi ne, %1, %c0_i32_0 : i32
    scf.if %2 {
      %cst_9 = arith.constant 0.000000e+00 : f32
      %15 = vector.broadcast %cst_9 : f32 to vector<256x16xf32>
      %c0_10 = arith.constant 0 : index
      %c0_11 = arith.constant 0 : index
      %16 = vector.load %arg7[%c0_10, %c0_11] : memref<256x16xf32, #tpu.memory_space<vmem>>, vector<256x16xf32>
      tpu.vector_store %arg7[%c0_10, %c0_11], %15 {strides = array<i32>} : memref<256x16xf32, #tpu.memory_space<vmem>>, vector<256x16xf32>,
    } else {
    }
    %c256_i32 = arith.constant 256 : i32
    %3 = arith.muli %arg1, %c256_i32 : i32
    %4 = tpu.assume_multiple %3, 256 : i32
    %5 = arith.index_cast %4 : i32 to index
    %c0 = arith.constant 0 : index
    %6 = vector.load %arg3[%5, %c0] : memref<256x16xbf16, #tpu.memory_space<vmem>>, vector<256x16xbf16>
    %c0_1 = arith.constant 0 : index
    %c0_2 = arith.constant 0 : index
    %7 = vector.load %arg7[%c0_1, %c0_2] : memref<256x16xf32, #tpu.memory_space<vmem>>, vector<256x16xf32>
    %c0_3 = arith.constant 0 : index
    %c0_4 = arith.constant 0 : index
    %8 = vector.load %arg2[%c0_3, %c0_4] : memref<256x256xbf16, #tpu.memory_space<vmem>>, vector<256x256xbf16>
    %cst = arith.constant dense<0.000000e+00> : vector<256x16xf32>
    %9 = tpu.matmul %8, %6, %cst {dimension_numbers = #tpu.dot_dimension_numbers<[1], [0], [0], [1], [0, 0, 1, 1], [], []>} : vector<256x256xbf16>, vector<256x16xbf16>, vector<256x16xf32> -> vector<256x16xf32>
    %10 = arith.addf %7, %9 : vector<256x16xf32>
    %c0_5 = arith.constant 0 : index
    %c0_6 = arith.constant 0 : index
    %11 = vector.load %arg7[%c0_5, %c0_6] : memref<256x16xf32, #tpu.memory_space<vmem>>, vector<256x16xf32>
    tpu.vector_store %arg7[%c0_5, %c0_6], %10 {strides = array<i32>} : memref<256x16xf32, #tpu.memory_space<vmem>>, vector<256x16xf32>,
    %c0_i32_7 = arith.constant 0 : i32
    %12 = arith.cmpi eq, %arg1, %c0_i32_7 : i32
    %13 = arith.extui %12 : i1 to i32
    %c0_i32_8 = arith.constant 0 : i32
    %14 = arith.cmpi ne, %13, %c0_i32_8 : i32
    scf.if %14 {
      %c0_9 = arith.constant 0 : index
      %c0_10 = arith.constant 0 : index
      %15 = vector.load %arg7[%c0_9, %c0_10] : memref<256x16xf32, #tpu.memory_space<vmem>>, vector<256x16xf32>
      %c0_11 = arith.constant 0 : index
      %c0_12 = arith.constant 0 : index
      %16 = vector.load %arg4[%c0_11, %c0_12] : memref<16x128xf32, #tpu.memory_space<vmem>>, vector<16x128xf32>
      %cst_13 = arith.constant dense<0.000000e+00> : vector<256x128xf32>
      %17 = tpu.matmul %15, %16, %cst_13 {dimension_numbers = #tpu.dot_dimension_numbers<[1], [0], [0], [1], [0, 0, 1, 1], [], []>} : vector<256x16xf32>, vector<16x128xf32>, vector<256x128xf32> -> vector<256x128xf32>
      %c0_14 = arith.constant 0 : index
      %c0_15 = arith.constant 0 : index
      %18 = vector.load %arg5[%c0_14, %c0_15] : memref<1x128xf32, #tpu.memory_space<vmem>>, vector<1x128xf32>
      %19 = vector.broadcast %18 : vector<1x128xf32> to vector<256x128xf32>
      %20 = arith.addf %17, %19 : vector<256x128xf32>
      %c0_16 = arith.constant 0 : index
      %c0_17 = arith.constant 0 : index
      %21 = vector.load %arg6[%c0_16, %c0_17] : memref<256x128xf32, #tpu.memory_space<vmem>>, vector<256x128xf32>
      tpu.vector_store %arg6[%c0_16, %c0_17], %20 {strides = array<i32>} : memref<256x128xf32, #tpu.memory_space<vmem>>, vector<256x128xf32>,
    } else {
    }
    return
  }
  func.func @transform_0(%arg0: i32, %arg1: i32) -> (i32, i32) {
    %c0_i32 = arith.constant 0 : i32
    return %arg0, %arg1 : i32, i32
  }
  func.func @transform_1(%arg0: i32, %arg1: i32) -> (i32, i32) {
    %c0_i32 = arith.constant 0 : i32
    %c0_i32_0 = arith.constant 0 : i32
    %c0_i32_1 = arith.constant 0 : i32
    return %c0_i32, %c0_i32_0 : i32, i32
  }
  func.func @transform_2(%arg0: i32, %arg1: i32) -> (i32, i32) {
    %c0_i32 = arith.constant 0 : i32
    %c0_i32_0 = arith.constant 0 : i32
    %c0_i32_1 = arith.constant 0 : i32
    return %c0_i32, %c0_i32_0 : i32, i32
  }
  func.func @transform_3(%arg0: i32, %arg1: i32) -> (i32, i32) {
    %c0_i32 = arith.constant 0 : i32
    %c0_i32_0 = arith.constant 0 : i32
    %c0_i32_1 = arith.constant 0 : i32
    return %c0_i32, %c0_i32_0 : i32, i32
  }
  func.func @transform_4(%arg0: i32, %arg1: i32) -> (i32, i32) {
    %c0_i32 = arith.constant 0 : i32
    %c0_i32_0 = arith.constant 0 : i32
    return %arg0, %c0_i32 : i32, i32
  }
}

</mosaic_0001>

<llo_original>
// kernel: gcn_forward_pallas.1
$region0: #{gcn_forward_pallas.1}
  #allocation0 [shape = 'u32[]', space=smem, size = 0x4, offset = 0x4, fixed_abs, tag = 'smem constant byte address 0x4 - core index']
  #allocation1 [shape = 'u32[144,128]{1,0:T(1,128)}', space=vmem, size = 0x12000, scoped, tag = 'internal scratch']
  #allocation2 [shape = 'f32[256,16]{1,0:T(8,128)}', space=vmem, size = 0x20000, scoped, tag = 'scratch operand']
  %s0 = inlined_call_operand.hbm [shape: bf16[256,256], index: 0, kind: input, shape index: {}]
  %s1 = inlined_call_operand.vmem [shape: bf16[256,16], index: 1, kind: input, shape index: {}]
  %s2 = inlined_call_operand.vmem [shape: f32[16,128], index: 2, kind: input, shape index: {}]
  %s3 = inlined_call_operand.vmem [shape: f32[1,128], index: 3, kind: input, shape index: {}]
  %s4 = inlined_call_operand.vmem [shape: f32[256,128], index: 4, kind: output, shape index: {}]
  %s5 = sld [smem:[#allocation0]]
  $region38: #{gcn_forward_pallas.1} parent=0
    _
  %s7 = ssub.s32 1, %s5
  %s8 = scalar_select 0, %s7, %s5
  $region1: #{gcn_forward_pallas.1} parent=0
    #allocation3 [shape = 'u8[131072]{0}', space=vmem, size = 0x20000, scoped, tag = 'input window, operand 0, single buffered']
    #allocation4 [shape = 's32[1]{0}', space=sflag, size = 0x4, scoped, tag = 'scoped memory for gcn_forward_pallas.1']
    %9 = vsyncpa [#allocation4], 0
    // Predicated region
    $region2: #{gcn_forward_pallas.1} parent=1 // pred_check
      _
    $region3: #{gcn_forward_pallas.1} parent=1 // pred_check_branch
      %11 = sbr.rel (0) target = $region5
    $region4: #{gcn_forward_pallas.1} parent=1 // pred_region
      %s13 = ssub.s32 4096, 4096
      %14 = vsyncadd [#allocation4], %s13
      %s15 = sshll.u32 [#allocation3], 4
      %s16 = int_to_ptr.vmem [resolvable:$true] %s15
      %21 = dma.hbm_to_vmem [thread:$0]  %s0, 4096, %s16, [#allocation4], 128, 128, 8
    $region5: #{gcn_forward_pallas.1} parent=1 // pred_fallthru
      _
    // Predicated region
    $region6: #{gcn_forward_pallas.1} parent=1 // pred_check
      _
    $region7: #{gcn_forward_pallas.1} parent=1 // pred_check_branch
      %23 = sbr.rel (0) target = $region9
    $region8: #{gcn_forward_pallas.1} parent=1 // pred_region
      _
    $region9: #{gcn_forward_pallas.1} parent=1 // pred_fallthru
      _
    // Predicated region
    $region10: #{gcn_forward_pallas.1} parent=1 // pred_check
      _
    $region11: #{gcn_forward_pallas.1} parent=1 // pred_check_branch
      %25 = sbr.rel (0) target = $region13
    $region12: #{gcn_forward_pallas.1} parent=1 // pred_region
      _
    $region13: #{gcn_forward_pallas.1} parent=1 // pred_fallthru
      _
    // Predicated region
    $region14: #{gcn_forward_pallas.1} parent=1 // pred_check
      _
    $region15: #{gcn_forward_pallas.1} parent=1 // pred_check_branch
      %27 = sbr.rel (0) target = $region17
    $region16: #{gcn_forward_pallas.1} parent=1 // pred_region
      _
    $region17: #{gcn_forward_pallas.1} parent=1 // pred_fallthru
      _
    // Predicated region
    $region18: #{gcn_forward_pallas.1} parent=1 // pred_check
      _
    $region19: #{gcn_forward_pallas.1} parent=1 // pred_check_branch
      %29 = sbr.rel (0) target = $region21
    $region20: #{gcn_forward_pallas.1} parent=1 // pred_region
      %30 = dma.done [#allocation4], 4096
    $region21: #{gcn_forward_pallas.1} parent=1 // pred_fallthru
      _
    %p32 = scmp.eq.s32.totalorder 0, 0
    // Predicated region
    $region22: #{gcn_forward_pallas.1} parent=1 // pred_check
      %p33 = pneg %p32
    $region23: #{gcn_forward_pallas.1} parent=1 // pred_check_branch
      %35 = sbr.rel (%p33) target = $region25
    $region24: #{gcn_forward_pallas.1} parent=1 // pred_region
      %vm36 = vcmask 130048
      %37 = vst.msk [vmem:[#allocation2] sm:$0xff] %vm36, 0.0
      %38 = vst.msk [vmem:[#allocation2 + $0x8] sm:$0xff] %vm36, 0.0
      %39 = vst.msk [vmem:[#allocation2 + $0x10] sm:$0xff] %vm36, 0.0
      %40 = vst.msk [vmem:[#allocation2 + $0x18] sm:$0xff] %vm36, 0.0
      %41 = vst.msk [vmem:[#allocation2 + $0x20] sm:$0xff] %vm36, 0.0
      %42 = vst.msk [vmem:[#allocation2 + $0x28] sm:$0xff] %vm36, 0.0
      %43 = vst.msk [vmem:[#allocation2 + $0x30] sm:$0xff] %vm36, 0.0
      %44 = vst.msk [vmem:[#allocation2 + $0x38] sm:$0xff] %vm36, 0.0
      %45 = vst.msk [vmem:[#allocation2 + $0x40] sm:$0xff] %vm36, 0.0
      %46 = vst.msk [vmem:[#allocation2 + $0x48] sm:$0xff] %vm36, 0.0
      %47 = vst.msk [vmem:[#allocation2 + $0x50] sm:$0xff] %vm36, 0.0
      %48 = vst.msk [vmem:[#allocation2 + $0x58] sm:$0xff] %vm36, 0.0
      %49 = vst.msk [vmem:[#allocation2 + $0x60] sm:$0xff] %vm36, 0.0
      %50 = vst.msk [vmem:[#allocation2 + $0x68] sm:$0xff] %vm36, 0.0
      %51 = vst.msk [vmem:[#allocation2 + $0x70] sm:$0xff] %vm36, 0.0
      %52 = vst.msk [vmem:[#allocation2 + $0x78] sm:$0xff] %vm36, 0.0
      %53 = vst.msk [vmem:[#allocation2 + $0x80] sm:$0xff] %vm36, 0.0
      %54 = vst.msk [vmem:[#allocation2 + $0x88] sm:$0xff] %vm36, 0.0
      %55 = vst.msk [vmem:[#allocation2 + $0x90] sm:$0xff] %vm36, 0.0
      %56 = vst.msk [vmem:[#allocation2 + $0x98] sm:$0xff] %vm36, 0.0
      %57 = vst.msk [vmem:[#allocation2 + $0xa0] sm:$0xff] %vm36, 0.0
      %58 = vst.msk [vmem:[#allocation2 + $0xa8] sm:$0xff] %vm36, 0.0
      %59 = vst.msk [vmem:[#allocation2 + $0xb0] sm:$0xff] %vm36, 0.0
      %60 = vst.msk [vmem:[#allocation2 + $0xb8] sm:$0xff] %vm36, 0.0
      %61 = vst.msk [vmem:[#allocation2 + $0xc0] sm:$0xff] %vm36, 0.0
      %62 = vst.msk [vmem:[#allocation2 + $0xc8] sm:$0xff] %vm36, 0.0
      %63 = vst.msk [vmem:[#allocation2 + $0xd0] sm:$0xff] %vm36, 0.0
      %64 = vst.msk [vmem:[#allocation2 + $0xd8] sm:$0xff] %vm36, 0.0
      %65 = vst.msk [vmem:[#allocation2 + $0xe0] sm:$0xff] %vm36, 0.0
      %66 = vst.msk [vmem:[#allocation2 + $0xe8] sm:$0xff] %vm36, 0.0
      %67 = vst.msk [vmem:[#allocation2 + $0xf0] sm:$0xff] %vm36, 0.0
      %68 = vst.msk [vmem:[#allocation2 + $0xf8] sm:$0xff] %vm36, 0.0
    $region25: #{gcn_forward_pallas.1} parent=1 // pred_fallthru
      _
    %s69 = smul.u32 0, 256
    %s70 = sshra.s32 %s69, 3
    %s71 = sand.u32 %s69, 7
    %s72 = smul.addr %s70, 4
    %s73 = scalar_lea.vmem %s1, %s72
    %v74 = vld [vmem:[%s73] sm:$0xf]
    %v75 = vld [vmem:[%s73 + $0x4] sm:$0xf]
    %v76 = vld [vmem:[%s73 + $0x8] sm:$0xf]
    %v77 = vld [vmem:[%s73 + $0xc] sm:$0xf]
    %v78 = vld [vmem:[%s73 + $0x10] sm:$0xf]
    %v79 = vld [vmem:[%s73 + $0x14] sm:$0xf]
    %v80 = vld [vmem:[%s73 + $0x18] sm:$0xf]
    %v81 = vld [vmem:[%s73 + $0x1c] sm:$0xf]
    %v82 = vld [vmem:[%s73 + $0x20] sm:$0xf]
    %v83 = vld [vmem:[%s73 + $0x24] sm:$0xf]
    %v84 = vld [vmem:[%s73 + $0x28] sm:$0xf]
    %v85 = vld [vmem:[%s73 + $0x2c] sm:$0xf]
    %v86 = vld [vmem:[%s73 + $0x30] sm:$0xf]
    %v87 = vld [vmem:[%s73 + $0x34] sm:$0xf]
    %v88 = vld [vmem:[%s73 + $0x38] sm:$0xf]
    %v89 = vld [vmem:[%s73 + $0x3c] sm:$0xf]
    %v90 = vld [vmem:[%s73 + $0x40] sm:$0xf]
    %v91 = vld [vmem:[%s73 + $0x44] sm:$0xf]
    %v92 = vld [vmem:[%s73 + $0x48] sm:$0xf]
    %v93 = vld [vmem:[%s73 + $0x4c] sm:$0xf]
    %v94 = vld [vmem:[%s73 + $0x50] sm:$0xf]
    %v95 = vld [vmem:[%s73 + $0x54] sm:$0xf]
    %v96 = vld [vmem:[%s73 + $0x58] sm:$0xf]
    %v97 = vld [vmem:[%s73 + $0x5c] sm:$0xf]
    %v98 = vld [vmem:[%s73 + $0x60] sm:$0xf]
    %v99 = vld [vmem:[%s73 + $0x64] sm:$0xf]
    %v100 = vld [vmem:[%s73 + $0x68] sm:$0xf]
    %v101 = vld [vmem:[%s73 + $0x6c] sm:$0xf]
    %v102 = vld [vmem:[%s73 + $0x70] sm:$0xf]
    %v103 = vld [vmem:[%s73 + $0x74] sm:$0xf]
    %v104 = vld [vmem:[%s73 + $0x78] sm:$0xf]
    %v105 = vld [vmem:[%s73 + $0x7c] sm:$0xf]
    %v106 = vld [vmem:[#allocation2] sm:$0xff]
    %v107 = vld [vmem:[#allocation2 + $0x8] sm:$0xff]
    %v108 = vld [vmem:[#allocation2 + $0x10] sm:$0xff]
    %v109 = vld [vmem:[#allocation2 + $0x18] sm:$0xff]
    %v110 = vld [vmem:[#allocation2 + $0x20] sm:$0xff]
    %v111 = vld [vmem:[#allocation2 + $0x28] sm:$0xff]
    %v112 = vld [vmem:[#allocation2 + $0x30] sm:$0xff]
    %v113 = vld [vmem:[#allocation2 + $0x38] sm:$0xff]
    %v114 = vld [vmem:[#allocation2 + $0x40] sm:$0xff]
    %v115 = vld [vmem:[#allocation2 + $0x48] sm:$0xff]
    %v116 = vld [vmem:[#allocation2 + $0x50] sm:$0xff]
    %v117 = vld [vmem:[#allocation2 + $0x58] sm:$0xff]
    %v118 = vld [vmem:[#allocation2 + $0x60] sm:$0xff]
    %v119 = vld [vmem:[#allocation2 + $0x68] sm:$0xff]
    %v120 = vld [vmem:[#allocation2 + $0x70] sm:$0xff]
    %v121 = vld [vmem:[#allocation2 + $0x78] sm:$0xff]
    %v122 = vld [vmem:[#allocation2 + $0x80] sm:$0xff]
    %v123 = vld [vmem:[#allocation2 + $0x88] sm:$0xff]
    %v124 = vld [vmem:[#allocation2 + $0x90] sm:$0xff]
    %v125 = vld [vmem:[#allocation2 + $0x98] sm:$0xff]
    %v126 = vld [vmem:[#allocation2 + $0xa0] sm:$0xff]
    %v127 = vld [vmem:[#allocation2 + $0xa8] sm:$0xff]
    %v128 = vld [vmem:[#allocation2 + $0xb0] sm:$0xff]
    %v129 = vld [vmem:[#allocation2 + $0xb8] sm:$0xff]
    %v130 = vld [vmem:[#allocation2 + $0xc0] sm:$0xff]
    %v131 = vld [vmem:[#allocation2 + $0xc8] sm:$0xff]
    %v132 = vld [vmem:[#allocation2 + $0xd0] sm:$0xff]
    %v133 = vld [vmem:[#allocation2 + $0xd8] sm:$0xff]
    %v134 = vld [vmem:[#allocation2 + $0xe0] sm:$0xff]
    %v135 = vld [vmem:[#allocation2 + $0xe8] sm:$0xff]
    %v136 = vld [vmem:[#allocation2 + $0xf0] sm:$0xff]
    %v137 = vld [vmem:[#allocation2 + $0xf8] sm:$0xff]
    %v138 = vld [vmem:[#allocation3] sm:$0xff]
    %v139 = vld [vmem:[#allocation3 + $0x8] sm:$0xff]
    %v140 = vld [vmem:[#allocation3 + $0x10] sm:$0xff]
    %v141 = vld [vmem:[#allocation3 + $0x18] sm:$0xff]
    %v142 = vld [vmem:[#allocation3 + $0x20] sm:$0xff]
    %v143 = vld [vmem:[#allocation3 + $0x28] sm:$0xff]
    %v144 = vld [vmem:[#allocation3 + $0x30] sm:$0xff]
    %v145 = vld [vmem:[#allocation3 + $0x38] sm:$0xff]
    %v146 = vld [vmem:[#allocation3 + $0x40] sm:$0xff]
    %v147 = vld [vmem:[#allocation3 + $0x48] sm:$0xff]
    %v148 = vld [vmem:[#allocation3 + $0x50] sm:$0xff]
    %v149 = vld [vmem:[#allocation3 + $0x58] sm:$0xff]
    %v150 = vld [vmem:[#allocation3 + $0x60] sm:$0xff]
    %v151 = vld [vmem:[#allocation3 + $0x68] sm:$0xff]
    %v152 = vld [vmem:[#allocation3 + $0x70] sm:$0xff]
    %v153 = vld [vmem:[#allocation3 + $0x78] sm:$0xff]
    %v154 = vld [vmem:[#allocation3 + $0x80] sm:$0xff]
    %v155 = vld [vmem:[#allocation3 + $0x88] sm:$0xff]
    %v156 = vld [vmem:[#allocation3 + $0x90] sm:$0xff]
    %v157 = vld [vmem:[#allocation3 + $0x98] sm:$0xff]
    %v158 = vld [vmem:[#allocation3 + $0xa0] sm:$0xff]
    %v159 = vld [vmem:[#allocation3 + $0xa8] sm:$0xff]
    %v160 = vld [vmem:[#allocation3 + $0xb0] sm:$0xff]
    %v161 = vld [vmem:[#allocation3 + $0xb8] sm:$0xff]
    %v162 = vld [vmem:[#allocation3 + $0xc0] sm:$0xff]
    %v163 = vld [vmem:[#allocation3 + $0xc8] sm:$0xff]
    %v164 = vld [vmem:[#allocation3 + $0xd0] sm:$0xff]
    %v165 = vld [vmem:[#allocation3 + $0xd8] sm:$0xff]
    %v166 = vld [vmem:[#allocation3 + $0xe0] sm:$0xff]
    %v167 = vld [vmem:[#allocation3 + $0xe8] sm:$0xff]
    %v168 = vld [vmem:[#allocation3 + $0xf0] sm:$0xff]
    %v169 = vld [vmem:[#allocation3 + $0xf8] sm:$0xff]
    %v202 = vunpack.c.l.b16 %v138
    %v203 = vunpack.c.h.b16 %v138
    %v204 = vunpack.c.l.b16 %v139
    %v205 = vunpack.c.h.b16 %v139
    %v206 = vunpack.c.l.b16 %v140
    %v207 = vunpack.c.h.b16 %v140
    %v208 = vunpack.c.l.b16 %v141
    %v209 = vunpack.c.h.b16 %v141
    %v210 = vunpack.c.l.b16 %v142
    %v211 = vunpack.c.h.b16 %v142
    %v212 = vunpack.c.l.b16 %v143
    %v213 = vunpack.c.h.b16 %v143
    %v214 = vunpack.c.l.b16 %v144
    %v215 = vunpack.c.h.b16 %v144
    %v216 = vunpack.c.l.b16 %v145
    %v217 = vunpack.c.h.b16 %v145
    %v218 = vunpack.c.l.b16 %v146
    %v219 = vunpack.c.h.b16 %v146
    %v220 = vunpack.c.l.b16 %v147
    %v221 = vunpack.c.h.b16 %v147
    %v222 = vunpack.c.l.b16 %v148
    %v223 = vunpack.c.h.b16 %v148
    %v224 = vunpack.c.l.b16 %v149
    %v225 = vunpack.c.h.b16 %v149
    %v226 = vunpack.c.l.b16 %v150
    %v227 = vunpack.c.h.b16 %v150
    %v228 = vunpack.c.l.b16 %v151
    %v229 = vunpack.c.h.b16 %v151
    %v230 = vunpack.c.l.b16 %v152
    %v231 = vunpack.c.h.b16 %v152
    %v232 = vunpack.c.l.b16 %v153
    %v233 = vunpack.c.h.b16 %v153
    %v234 = vunpack.c.l.b16 %v154
    %v235 = vunpack.c.h.b16 %v154
    %v236 = vunpack.c.l.b16 %v155
    %v237 = vunpack.c.h.b16 %v155
    %v238 = vunpack.c.l.b16 %v156
    %v239 = vunpack.c.h.b16 %v156
    %v240 = vunpack.c.l.b16 %v157
    %v241 = vunpack.c.h.b16 %v157
    %v242 = vunpack.c.l.b16 %v158
    %v243 = vunpack.c.h.b16 %v158
    %v244 = vunpack.c.l.b16 %v159
    %v245 = vunpack.c.h.b16 %v159
    %v246 = vunpack.c.l.b16 %v160
    %v247 = vunpack.c.h.b16 %v160
    %v248 = vunpack.c.l.b16 %v161
    %v249 = vunpack.c.h.b16 %v161
    %v250 = vunpack.c.l.b16 %v162
    %v251 = vunpack.c.h.b16 %v162
    %v252 = vunpack.c.l.b16 %v163
    %v253 = vunpack.c.h.b16 %v163
    %v254 = vunpack.c.l.b16 %v164
    %v255 = vunpack.c.h.b16 %v164
    %v256 = vunpack.c.l.b16 %v165
    %v257 = vunpack.c.h.b16 %v165
    %v258 = vunpack.c.l.b16 %v166
    %v259 = vunpack.c.h.b16 %v166
    %v260 = vunpack.c.l.b16 %v167
    %v261 = vunpack.c.h.b16 %v167
    %v262 = vunpack.c.l.b16 %v168
    %v263 = vunpack.c.h.b16 %v168
    %v264 = vunpack.c.l.b16 %v169
    %v265 = vunpack.c.h.b16 %v169
    %v266 = vpack.c.b16 %v204, %v202
    %v267 = vpack.c.b16 %v205, %v203
    %v268 = vpack.c.b16 %v208, %v206
    %v269 = vpack.c.b16 %v209, %v207
    %v270 = vpack.c.b16 %v212, %v210
    %v271 = vpack.c.b16 %v213, %v211
    %v272 = vpack.c.b16 %v216, %v214
    %v273 = vpack.c.b16 %v217, %v215
    %v274 = vpack.c.b16 %v220, %v218
    %v275 = vpack.c.b16 %v221, %v219
    %v276 = vpack.c.b16 %v224, %v222
    %v277 = vpack.c.b16 %v225, %v223
    %v278 = vpack.c.b16 %v228, %v226
    %v279 = vpack.c.b16 %v229, %v227
    %v280 = vpack.c.b16 %v232, %v230
    %v281 = vpack.c.b16 %v233, %v231
    %v282 = vpack.c.b16 %v236, %v234
    %v283 = vpack.c.b16 %v237, %v235
    %v284 = vpack.c.b16 %v240, %v238
    %v285 = vpack.c.b16 %v241, %v239
    %v286 = vpack.c.b16 %v244, %v242
    %v287 = vpack.c.b16 %v245, %v243
    %v288 = vpack.c.b16 %v248, %v246
    %v289 = vpack.c.b16 %v249, %v247
    %v290 = vpack.c.b16 %v252, %v250
    %v291 = vpack.c.b16 %v253, %v251
    %v292 = vpack.c.b16 %v256, %v254
    %v293 = vpack.c.b16 %v257, %v255
    %v294 = vpack.c.b16 %v260, %v258
    %v295 = vpack.c.b16 %v261, %v259
    %v296 = vpack.c.b16 %v264, %v262
    %v297 = vpack.c.b16 %v265, %v263
    %v362 = vunpack.c.l.b16 %v74
    %v363 = vunpack.c.l.b16 %v75
    %v364 = vunpack.c.l.b16 %v76
    %v365 = vunpack.c.l.b16 %v77
    %v366 = vunpack.c.l.b16 %v78
    %v367 = vunpack.c.l.b16 %v79
    %v368 = vunpack.c.l.b16 %v80
    %v369 = vunpack.c.l.b16 %v81
    %v370 = vunpack.c.l.b16 %v82
    %v371 = vunpack.c.l.b16 %v83
    %v372 = vunpack.c.l.b16 %v84
    %v373 = vunpack.c.l.b16 %v85
    %v374 = vunpack.c.l.b16 %v86
    %v375 = vunpack.c.l.b16 %v87
    %v376 = vunpack.c.l.b16 %v88
    %v377 = vunpack.c.l.b16 %v89
    %v378 = vunpack.c.l.b16 %v90
    %v379 = vunpack.c.l.b16 %v91
    %v380 = vunpack.c.l.b16 %v92
    %v381 = vunpack.c.l.b16 %v93
    %v382 = vunpack.c.l.b16 %v94
    %v383 = vunpack.c.l.b16 %v95
    %v384 = vunpack.c.l.b16 %v96
    %v385 = vunpack.c.l.b16 %v97
    %v386 = vunpack.c.l.b16 %v98
    %v387 = vunpack.c.l.b16 %v99
    %v388 = vunpack.c.l.b16 %v100
    %v389 = vunpack.c.l.b16 %v101
    %v390 = vunpack.c.l.b16 %v102
    %v391 = vunpack.c.l.b16 %v103
    %v392 = vunpack.c.l.b16 %v104
    %v393 = vunpack.c.l.b16 %v105
    %v394 = vpack.c.b16 %v363, %v362
    %v395 = vpack.c.b16 %v365, %v364
    %v396 = vpack.c.b16 %v367, %v366
    %v397 = vpack.c.b16 %v369, %v368
    %v398 = vpack.c.b16 %v371, %v370
    %v399 = vpack.c.b16 %v373, %v372
    %v400 = vpack.c.b16 %v375, %v374
    %v401 = vpack.c.b16 %v377, %v376
    %v402 = vpack.c.b16 %v379, %v378
    %v403 = vpack.c.b16 %v381, %v380
    %v404 = vpack.c.b16 %v383, %v382
    %v405 = vpack.c.b16 %v385, %v384
    %v406 = vpack.c.b16 %v387, %v386
    %v407 = vpack.c.b16 %v389, %v388
    %v408 = vpack.c.b16 %v391, %v390
    %v409 = vpack.c.b16 %v393, %v392
    %426 = vmatprep.subr.bf16.mxu0 0
    %427 = vmatpush1.bf16.msra.mxu0 %v401
    %428 = vmatprep.subr.bf16.mxu0 0
    %429 = vmatpush1.bf16.msra.mxu0 %v400
    %430 = vmatprep.subr.bf16.mxu0 0
    %431 = vmatpush1.bf16.msra.mxu0 %v399
    %432 = vmatprep.subr.bf16.mxu0 0
    %433 = vmatpush1.bf16.msra.mxu0 %v398
    %434 = vmatprep.subr.bf16.mxu0 0
    %435 = vmatpush1.bf16.msra.mxu0 %v397
    %436 = vmatprep.subr.bf16.mxu0 0
    %437 = vmatpush1.bf16.msra.mxu0 %v396
    %438 = vmatprep.subr.bf16.mxu0 0
    %439 = vmatpush1.bf16.msra.mxu0 %v395
    %440 = vmatprep.subr.bf16.mxu0 0
    %441 = vmatpush1.bf16.msra.mxu0 %v394
    %442 = vmatprep.subr.bf16.mxu0 0
    %443 = vmatpush2.bf16.msra.mxu0 %v409
    %444 = vmatprep.subr.bf16.mxu0 0
    %445 = vmatpush2.bf16.msra.mxu0 %v408
    %446 = vmatprep.subr.bf16.mxu0 0
    %447 = vmatpush2.bf16.msra.mxu0 %v407
    %448 = vmatprep.subr.bf16.mxu0 0
    %449 = vmatpush2.bf16.msra.mxu0 %v406
    %450 = vmatprep.subr.bf16.mxu0 0
    %451 = vmatpush2.bf16.msra.mxu0 %v405
    %452 = vmatprep.subr.bf16.mxu0 0
    %453 = vmatpush2.bf16.msra.mxu0 %v404
    %454 = vmatprep.subr.bf16.mxu0 0
    %455 = vmatpush2.bf16.msra.mxu0 %v403
    %456 = vmatprep.subr.bf16.mxu0 0
    %457 = vmatpush2.bf16.msra.mxu0 %v402
    %458 = vmatprep.mubr.bf16.mxu0 %v267
    %459 = vmatmul.mubr.bf16.gmra.mxu0 %v266
    %v460 = vpop.f32.mrf.mxu0
    %v461 = vadd.f32 0.0, %v460
    %v462 = vpop.f32.mrf.mxu0
    %v463 = vpop.f32.mrf.mxu0
    %v464 = vadd.f32 0.0, %v463
    %v465 = vpop.f32.mrf.mxu0
    %466 = vmatprep.mubr.bf16.mxu0 %v269
    %467 = vmatmul.mubr.bf16.gmra.mxu0 %v268
    %v468 = vpop.f32.mrf.mxu0
    %v469 = vadd.f32 0.0, %v468
    %v470 = vpop.f32.mrf.mxu0
    %v471 = vpop.f32.mrf.mxu0
    %v472 = vadd.f32 0.0, %v471
    %v473 = vpop.f32.mrf.mxu0
    %474 = vmatprep.mubr.bf16.mxu0 %v271
    %475 = vmatmul.mubr.bf16.gmra.mxu0 %v270
    %v476 = vpop.f32.mrf.mxu0
    %v477 = vadd.f32 0.0, %v476
    %v478 = vpop.f32.mrf.mxu0
    %v479 = vpop.f32.mrf.mxu0
    %v480 = vadd.f32 0.0, %v479
    %v481 = vpop.f32.mrf.mxu0
    %482 = vmatprep.mubr.bf16.mxu0 %v273
    %483 = vmatmul.mubr.bf16.gmra.mxu0 %v272
    %v484 = vpop.f32.mrf.mxu0
    %v485 = vadd.f32 0.0, %v484
    %v486 = vpop.f32.mrf.mxu0
    %v487 = vpop.f32.mrf.mxu0
    %v488 = vadd.f32 0.0, %v487
    %v489 = vpop.f32.mrf.mxu0
    %490 = vmatprep.mubr.bf16.mxu0 %v275
    %491 = vmatmul.mubr.bf16.gmra.mxu0 %v274
    %v492 = vpop.f32.mrf.mxu0
    %v493 = vadd.f32 0.0, %v492
    %v494 = vpop.f32.mrf.mxu0
    %v495 = vpop.f32.mrf.mxu0
    %v496 = vadd.f32 0.0, %v495
    %v497 = vpop.f32.mrf.mxu0
    %498 = vmatprep.mubr.bf16.mxu0 %v277
    %499 = vmatmul.mubr.bf16.gmra.mxu0 %v276
    %v500 = vpop.f32.mrf.mxu0
    %v501 = vadd.f32 0.0, %v500
    %v502 = vpop.f32.mrf.mxu0
    %v503 = vpop.f32.mrf.mxu0
    %v504 = vadd.f32 0.0, %v503
    %v505 = vpop.f32.mrf.mxu0
    %506 = vmatprep.mubr.bf16.mxu0 %v279
    %507 = vmatmul.mubr.bf16.gmra.mxu0 %v278
    %v508 = vpop.f32.mrf.mxu0
    %v509 = vadd.f32 0.0, %v508
    %v510 = vpop.f32.mrf.mxu0
    %v511 = vpop.f32.mrf.mxu0
    %v512 = vadd.f32 0.0, %v511
    %v513 = vpop.f32.mrf.mxu0
    %514 = vmatprep.mubr.bf16.mxu0 %v281
    %515 = vmatmul.mubr.bf16.gmra.mxu0 %v280
    %v516 = vpop.f32.mrf.mxu0
    %v517 = vadd.f32 0.0, %v516
    %v518 = vpop.f32.mrf.mxu0
    %v519 = vpop.f32.mrf.mxu0
    %v520 = vadd.f32 0.0, %v519
    %v521 = vpop.f32.mrf.mxu0
    %522 = vmatprep.mubr.bf16.mxu0 %v283
    %523 = vmatmul.mubr.bf16.gmra.mxu0 %v282
    %v524 = vpop.f32.mrf.mxu0
    %v525 = vadd.f32 0.0, %v524
    %v526 = vpop.f32.mrf.mxu0
    %v527 = vpop.f32.mrf.mxu0
    %v528 = vadd.f32 0.0, %v527
    %v529 = vpop.f32.mrf.mxu0
    %530 = vmatprep.mubr.bf16.mxu0 %v285
    %531 = vmatmul.mubr.bf16.gmra.mxu0 %v284
    %v532 = vpop.f32.mrf.mxu0
    %v533 = vadd.f32 0.0, %v532
    %v534 = vpop.f32.mrf.mxu0
    %v535 = vpop.f32.mrf.mxu0
    %v536 = vadd.f32 0.0, %v535
    %v537 = vpop.f32.mrf.mxu0
    %538 = vmatprep.mubr.bf16.mxu0 %v287
    %539 = vmatmul.mubr.bf16.gmra.mxu0 %v286
    %v540 = vpop.f32.mrf.mxu0
    %v541 = vadd.f32 0.0, %v540
    %v542 = vpop.f32.mrf.mxu0
    %v543 = vpop.f32.mrf.mxu0
    %v544 = vadd.f32 0.0, %v543
    %v545 = vpop.f32.mrf.mxu0
    %546 = vmatprep.mubr.bf16.mxu0 %v289
    %547 = vmatmul.mubr.bf16.gmra.mxu0 %v288
    %v548 = vpop.f32.mrf.mxu0
    %v549 = vadd.f32 0.0, %v548
    %v550 = vpop.f32.mrf.mxu0
    %v551 = vpop.f32.mrf.mxu0
    %v552 = vadd.f32 0.0, %v551
    %v553 = vpop.f32.mrf.mxu0
    %554 = vmatprep.mubr.bf16.mxu0 %v291
    %555 = vmatmul.mubr.bf16.gmra.mxu0 %v290
    %v556 = vpop.f32.mrf.mxu0
    %v557 = vadd.f32 0.0, %v556
    %v558 = vpop.f32.mrf.mxu0
    %v559 = vpop.f32.mrf.mxu0
    %v560 = vadd.f32 0.0, %v559
    %v561 = vpop.f32.mrf.mxu0
    %562 = vmatprep.mubr.bf16.mxu0 %v293
    %563 = vmatmul.mubr.bf16.gmra.mxu0 %v292
    %v564 = vpop.f32.mrf.mxu0
    %v565 = vadd.f32 0.0, %v564
    %v566 = vpop.f32.mrf.mxu0
    %v567 = vpop.f32.mrf.mxu0
    %v568 = vadd.f32 0.0, %v567
    %v569 = vpop.f32.mrf.mxu0
    %570 = vmatprep.mubr.bf16.mxu0 %v295
    %571 = vmatmul.mubr.bf16.gmra.mxu0 %v294
    %v572 = vpop.f32.mrf.mxu0
    %v573 = vadd.f32 0.0, %v572
    %v574 = vpop.f32.mrf.mxu0
    %v575 = vpop.f32.mrf.mxu0
    %v576 = vadd.f32 0.0, %v575
    %v577 = vpop.f32.mrf.mxu0
    %578 = vmatprep.mubr.bf16.mxu0 %v297
    %579 = vmatmul.mubr.bf16.gmra.mxu0 %v296
    %v580 = vpop.f32.mrf.mxu0
    %v581 = vadd.f32 0.0, %v580
    %v582 = vpop.f32.mrf.mxu0
    %v583 = vpop.f32.mrf.mxu0
    %v584 = vadd.f32 0.0, %v583
    %v585 = vpop.f32.mrf.mxu0
    %586 = vdwg.mxu0
    %v587 = vadd.f32 %v106, %v461
    %v588 = vadd.f32 %v107, %v464
    %v589 = vadd.f32 %v108, %v469
    %v590 = vadd.f32 %v109, %v472
    %v591 = vadd.f32 %v110, %v477
    %v592 = vadd.f32 %v111, %v480
    %v593 = vadd.f32 %v112, %v485
    %v594 = vadd.f32 %v113, %v488
    %v595 = vadd.f32 %v114, %v493
    %v596 = vadd.f32 %v115, %v496
    %v597 = vadd.f32 %v116, %v501
    %v598 = vadd.f32 %v117, %v504
    %v599 = vadd.f32 %v118, %v509
    %v600 = vadd.f32 %v119, %v512
    %v601 = vadd.f32 %v120, %v517
    %v602 = vadd.f32 %v121, %v520
    %v603 = vadd.f32 %v122, %v525
    %v604 = vadd.f32 %v123, %v528
    %v605 = vadd.f32 %v124, %v533
    %v606 = vadd.f32 %v125, %v536
    %v607 = vadd.f32 %v126, %v541
    %v608 = vadd.f32 %v127, %v544
    %v609 = vadd.f32 %v128, %v549
    %v610 = vadd.f32 %v129, %v552
    %v611 = vadd.f32 %v130, %v557
    %v612 = vadd.f32 %v131, %v560
    %v613 = vadd.f32 %v132, %v565
    %v614 = vadd.f32 %v133, %v568
    %v615 = vadd.f32 %v134, %v573
    %v616 = vadd.f32 %v135, %v576
    %v617 = vadd.f32 %v136, %v581
    %v618 = vadd.f32 %v137, %v584
    %vm619 = vcmask 130048
    %620 = vst.msk [vmem:[#allocation2] sm:$0xff] %vm619, %v587
    %621 = vst.msk [vmem:[#allocation2 + $0x8] sm:$0xff] %vm619, %v588
    %622 = vst.msk [vmem:[#allocation2 + $0x10] sm:$0xff] %vm619, %v589
    %623 = vst.msk [vmem:[#allocation2 + $0x18] sm:$0xff] %vm619, %v590
    %624 = vst.msk [vmem:[#allocation2 + $0x20] sm:$0xff] %vm619, %v591
    %625 = vst.msk [vmem:[#allocation2 + $0x28] sm:$0xff] %vm619, %v592
    %626 = vst.msk [vmem:[#allocation2 + $0x30] sm:$0xff] %vm619, %v593
    %627 = vst.msk [vmem:[#allocation2 + $0x38] sm:$0xff] %vm619, %v594
    %628 = vst.msk [vmem:[#allocation2 + $0x40] sm:$0xff] %vm619, %v595
    %629 = vst.msk [vmem:[#allocation2 + $0x48] sm:$0xff] %vm619, %v596
    %630 = vst.msk [vmem:[#allocation2 + $0x50] sm:$0xff] %vm619, %v597
    %631 = vst.msk [vmem:[#allocation2 + $0x58] sm:$0xff] %vm619, %v598
    %632 = vst.msk [vmem:[#allocation2 + $0x60] sm:$0xff] %vm619, %v599
    %633 = vst.msk [vmem:[#allocation2 + $0x68] sm:$0xff] %vm619, %v600
    %634 = vst.msk [vmem:[#allocation2 + $0x70] sm:$0xff] %vm619, %v601
    %635 = vst.msk [vmem:[#allocation2 + $0x78] sm:$0xff] %vm619, %v602
    %636 = vst.msk [vmem:[#allocation2 + $0x80] sm:$0xff] %vm619, %v603
    %637 = vst.msk [vmem:[#allocation2 + $0x88] sm:$0xff] %vm619, %v604
    %638 = vst.msk [vmem:[#allocation2 + $0x90] sm:$0xff] %vm619, %v605
    %639 = vst.msk [vmem:[#allocation2 + $0x98] sm:$0xff] %vm619, %v606
    %640 = vst.msk [vmem:[#allocation2 + $0xa0] sm:$0xff] %vm619, %v607
    %641 = vst.msk [vmem:[#allocation2 + $0xa8] sm:$0xff] %vm619, %v608
    %642 = vst.msk [vmem:[#allocation2 + $0xb0] sm:$0xff] %vm619, %v609
    %643 = vst.msk [vmem:[#allocation2 + $0xb8] sm:$0xff] %vm619, %v610
    %644 = vst.msk [vmem:[#allocation2 + $0xc0] sm:$0xff] %vm619, %v611
    %645 = vst.msk [vmem:[#allocation2 + $0xc8] sm:$0xff] %vm619, %v612
    %646 = vst.msk [vmem:[#allocation2 + $0xd0] sm:$0xff] %vm619, %v613
    %647 = vst.msk [vmem:[#allocation2 + $0xd8] sm:$0xff] %vm619, %v614
    %648 = vst.msk [vmem:[#allocation2 + $0xe0] sm:$0xff] %vm619, %v615
    %649 = vst.msk [vmem:[#allocation2 + $0xe8] sm:$0xff] %vm619, %v616
    %650 = vst.msk [vmem:[#allocation2 + $0xf0] sm:$0xff] %vm619, %v617
    %651 = vst.msk [vmem:[#allocation2 + $0xf8] sm:$0xff] %vm619, %v618
    // Predicated region
    $region26: #{gcn_forward_pallas.1} parent=1 // pred_check
      %p652 = pneg %p32
    $region27: #{gcn_forward_pallas.1} parent=1 // pred_check_branch
      %654 = sbr.rel (%p652) target = $region29
    $region28: #{gcn_forward_pallas.1} parent=1 // pred_region
      %v655 = vld [vmem:[#allocation2] sm:$0xff]
      %v656 = vld [vmem:[#allocation2 + $0x8] sm:$0xff]
      %v657 = vld [vmem:[#allocation2 + $0x10] sm:$0xff]
      %v658 = vld [vmem:[#allocation2 + $0x18] sm:$0xff]
      %v659 = vld [vmem:[#allocation2 + $0x20] sm:$0xff]
      %v660 = vld [vmem:[#allocation2 + $0x28] sm:$0xff]
      %v661 = vld [vmem:[#allocation2 + $0x30] sm:$0xff]
      %v662 = vld [vmem:[#allocation2 + $0x38] sm:$0xff]
      %v663 = vld [vmem:[#allocation2 + $0x40] sm:$0xff]
      %v664 = vld [vmem:[#allocation2 + $0x48] sm:$0xff]
      %v665 = vld [vmem:[#allocation2 + $0x50] sm:$0xff]
      %v666 = vld [vmem:[#allocation2 + $0x58] sm:$0xff]
      %v667 = vld [vmem:[#allocation2 + $0x60] sm:$0xff]
      %v668 = vld [vmem:[#allocation2 + $0x68] sm:$0xff]
      %v669 = vld [vmem:[#allocation2 + $0x70] sm:$0xff]
      %v670 = vld [vmem:[#allocation2 + $0x78] sm:$0xff]
      %v671 = vld [vmem:[#allocation2 + $0x80] sm:$0xff]
      %v672 = vld [vmem:[#allocation2 + $0x88] sm:$0xff]
      %v673 = vld [vmem:[#allocation2 + $0x90] sm:$0xff]
      %v674 = vld [vmem:[#allocation2 + $0x98] sm:$0xff]
      %v675 = vld [vmem:[#allocation2 + $0xa0] sm:$0xff]
      %v676 = vld [vmem:[#allocation2 + $0xa8] sm:$0xff]
      %v677 = vld [vmem:[#allocation2 + $0xb0] sm:$0xff]
      %v678 = vld [vmem:[#allocation2 + $0xb8] sm:$0xff]
      %v679 = vld [vmem:[#allocation2 + $0xc0] sm:$0xff]
      %v680 = vld [vmem:[#allocation2 + $0xc8] sm:$0xff]
      %v681 = vld [vmem:[#allocation2 + $0xd0] sm:$0xff]
      %v682 = vld [vmem:[#allocation2 + $0xd8] sm:$0xff]
      %v683 = vld [vmem:[#allocation2 + $0xe0] sm:$0xff]
      %v684 = vld [vmem:[#allocation2 + $0xe8] sm:$0xff]
      %v685 = vld [vmem:[#allocation2 + $0xf0] sm:$0xff]
      %v686 = vld [vmem:[#allocation2 + $0xf8] sm:$0xff]
      %v687 = vld [vmem:[%s2] sm:$0xff]
      %v688 = vld [vmem:[%s2 + $0x8] sm:$0xff]
      %v689 = vld [vmem:[%s3] sm:$0x1]
      %v691 = vlaneseq
      %v692 = vshrl.u32 %v691, 7
      %v693 = vsub.s32 0, %v692
      %v694 = vrot.slane %v689, %v693
      %v697 = vsel %vm619, %v655, 0
      %v700 = vsel %vm619, %v656, 0
      %v703 = vsel %vm619, %v657, 0
      %v706 = vsel %vm619, %v658, 0
      %v709 = vsel %vm619, %v659, 0
      %v712 = vsel %vm619, %v660, 0
      %v715 = vsel %vm619, %v661, 0
      %v718 = vsel %vm619, %v662, 0
      %v721 = vsel %vm619, %v663, 0
      %v724 = vsel %vm619, %v664, 0
      %v727 = vsel %vm619, %v665, 0
      %v730 = vsel %vm619, %v666, 0
      %v733 = vsel %vm619, %v667, 0
      %v736 = vsel %vm619, %v668, 0
      %v739 = vsel %vm619, %v669, 0
      %v742 = vsel %vm619, %v670, 0
      %v745 = vsel %vm619, %v671, 0
      %v748 = vsel %vm619, %v672, 0
      %v751 = vsel %vm619, %v673, 0
      %v754 = vsel %vm619, %v674, 0
      %v757 = vsel %vm619, %v675, 0
      %v760 = vsel %vm619, %v676, 0
      %v763 = vsel %vm619, %v677, 0
      %v766 = vsel %vm619, %v678, 0
      %v769 = vsel %vm619, %v679, 0
      %v772 = vsel %vm619, %v680, 0
      %v775 = vsel %vm619, %v681, 0
      %v778 = vsel %vm619, %v682, 0
      %v781 = vsel %vm619, %v683, 0
      %v784 = vsel %vm619, %v684, 0
      %v787 = vsel %vm619, %v685, 0
      %v790 = vsel %vm619, %v686, 0
      %792 = vmatprep.subr.mxu0 0.0
      %793 = vmatpush1.msra.mxu0 0.0
      %794 = vmatprep.subr.mxu0 0.0
      %795 = vmatpush1.msra.mxu0 0.0
      %796 = vmatprep.subr.mxu0 0.0
      %797 = vmatpush1.msra.mxu0 0.0
      %798 = vmatprep.subr.mxu0 0.0
      %799 = vmatpush1.msra.mxu0 0.0
      %800 = vmatprep.subr.mxu0 0.0
      %801 = vmatpush1.msra.mxu0 0.0
      %802 = vmatprep.subr.mxu0 0.0
      %803 = vmatpush1.msra.mxu0 0.0
      %804 = vmatprep.subr.mxu0 0.0
      %805 = vmatpush1.msra.mxu0 0.0
      %806 = vmatprep.subr.mxu0 0.0
      %807 = vmatpush1.msra.mxu0 0.0
      %808 = vmatprep.subr.mxu0 0.0
      %809 = vmatpush1.msra.mxu0 0.0
      %810 = vmatprep.subr.mxu0 0.0
      %811 = vmatpush1.msra.mxu0 0.0
      %812 = vmatprep.subr.mxu0 0.0
      %813 = vmatpush1.msra.mxu0 0.0
      %814 = vmatprep.subr.mxu0 0.0
      %815 = vmatpush1.msra.mxu0 0.0
      %816 = vmatprep.subr.mxu0 0.0
      %817 = vmatpush1.msra.mxu0 0.0
      %818 = vmatprep.subr.mxu0 0.0
      %819 = vmatpush1.msra.mxu0 0.0
      %820 = vmatprep.subr.mxu0 0.0
      %821 = vmatpush1.msra.mxu0 %v688
      %822 = vmatprep.subr.mxu0 0.0
      %823 = vmatpush1.msra.mxu0 %v687
      %824 = vmatprep.subr.mxu0 0.0
      %825 = vmatpush2.msra.mxu0 0.0
      %826 = vmatprep.subr.mxu0 0.0
      %827 = vmatpush2.msra.mxu0 0.0
      %828 = vmatprep.subr.mxu0 0.0
      %829 = vmatpush2.msra.mxu0 0.0
      %830 = vmatprep.subr.mxu0 0.0
      %831 = vmatpush2.msra.mxu0 0.0
      %832 = vmatprep.subr.mxu0 0.0
      %833 = vmatpush2.msra.mxu0 0.0
      %834 = vmatprep.subr.mxu0 0.0
      %835 = vmatpush2.msra.mxu0 0.0
      %836 = vmatprep.subr.mxu0 0.0
      %837 = vmatpush2.msra.mxu0 0.0
      %838 = vmatprep.subr.mxu0 0.0
      %839 = vmatpush2.msra.mxu0 0.0
      %840 = vmatprep.subr.mxu0 0.0
      %841 = vmatpush2.msra.mxu0 0.0
      %842 = vmatprep.subr.mxu0 0.0
      %843 = vmatpush2.msra.mxu0 0.0
      %844 = vmatprep.subr.mxu0 0.0
      %845 = vmatpush2.msra.mxu0 0.0
      %846 = vmatprep.subr.mxu0 0.0
      %847 = vmatpush2.msra.mxu0 0.0
      %848 = vmatprep.subr.mxu0 0.0
      %849 = vmatpush2.msra.mxu0 0.0
      %850 = vmatprep.subr.mxu0 0.0
      %851 = vmatpush2.msra.mxu0 0.0
      %852 = vmatprep.subr.mxu0 0.0
      %853 = vmatpush2.msra.mxu0 0.0
      %854 = vmatprep.subr.mxu0 0.0
      %855 = vmatpush2.msra.mxu0 0.0
      %856 = vmatprep.mubr.f32.mxu0 0.0
      %857 = vmatmul.mubr.f32.gmra.mxu0 %v697
      %v858 = vpop.f32.mrf.mxu0
      %v859 = vadd.f32 %v694, %v858
      %v860 = vpop.f32.mrf.mxu0
      %861 = vmatprep.mubr.f32.mxu0 0.0
      %862 = vmatmul.mubr.f32.gmra.mxu0 %v700
      %v863 = vpop.f32.mrf.mxu0
      %v864 = vadd.f32 %v694, %v863
      %v865 = vpop.f32.mrf.mxu0
      %866 = vmatprep.mubr.f32.mxu0 0.0
      %867 = vmatmul.mubr.f32.gmra.mxu0 %v703
      %v868 = vpop.f32.mrf.mxu0
      %v869 = vadd.f32 %v694, %v868
      %v870 = vpop.f32.mrf.mxu0
      %871 = vmatprep.mubr.f32.mxu0 0.0
      %872 = vmatmul.mubr.f32.gmra.mxu0 %v706
      %v873 = vpop.f32.mrf.mxu0
      %v874 = vadd.f32 %v694, %v873
      %v875 = vpop.f32.mrf.mxu0
      %876 = vmatprep.mubr.f32.mxu0 0.0
      %877 = vmatmul.mubr.f32.gmra.mxu0 %v709
      %v878 = vpop.f32.mrf.mxu0
      %v879 = vadd.f32 %v694, %v878
      %v880 = vpop.f32.mrf.mxu0
      %881 = vmatprep.mubr.f32.mxu0 0.0
      %882 = vmatmul.mubr.f32.gmra.mxu0 %v712
      %v883 = vpop.f32.mrf.mxu0
      %v884 = vadd.f32 %v694, %v883
      %v885 = vpop.f32.mrf.mxu0
      %886 = vmatprep.mubr.f32.mxu0 0.0
      %887 = vmatmul.mubr.f32.gmra.mxu0 %v715
      %v888 = vpop.f32.mrf.mxu0
      %v889 = vadd.f32 %v694, %v888
      %v890 = vpop.f32.mrf.mxu0
      %891 = vmatprep.mubr.f32.mxu0 0.0
      %892 = vmatmul.mubr.f32.gmra.mxu0 %v718
      %v893 = vpop.f32.mrf.mxu0
      %v894 = vadd.f32 %v694, %v893
      %v895 = vpop.f32.mrf.mxu0
      %896 = vmatprep.mubr.f32.mxu0 0.0
      %897 = vmatmul.mubr.f32.gmra.mxu0 %v721
      %v898 = vpop.f32.mrf.mxu0
      %v899 = vadd.f32 %v694, %v898
      %v900 = vpop.f32.mrf.mxu0
      %901 = vmatprep.mubr.f32.mxu0 0.0
      %902 = vmatmul.mubr.f32.gmra.mxu0 %v724
      %v903 = vpop.f32.mrf.mxu0
      %v904 = vadd.f32 %v694, %v903
      %v905 = vpop.f32.mrf.mxu0
      %906 = vmatprep.mubr.f32.mxu0 0.0
      %907 = vmatmul.mubr.f32.gmra.mxu0 %v727
      %v908 = vpop.f32.mrf.mxu0
      %v909 = vadd.f32 %v694, %v908
      %v910 = vpop.f32.mrf.mxu0
      %911 = vmatprep.mubr.f32.mxu0 0.0
      %912 = vmatmul.mubr.f32.gmra.mxu0 %v730
      %v913 = vpop.f32.mrf.mxu0
      %v914 = vadd.f32 %v694, %v913
      %v915 = vpop.f32.mrf.mxu0
      %916 = vmatprep.mubr.f32.mxu0 0.0
      %917 = vmatmul.mubr.f32.gmra.mxu0 %v733
      %v918 = vpop.f32.mrf.mxu0
      %v919 = vadd.f32 %v694, %v918
      %v920 = vpop.f32.mrf.mxu0
      %921 = vmatprep.mubr.f32.mxu0 0.0
      %922 = vmatmul.mubr.f32.gmra.mxu0 %v736
      %v923 = vpop.f32.mrf.mxu0
      %v924 = vadd.f32 %v694, %v923
      %v925 = vpop.f32.mrf.mxu0
      %926 = vmatprep.mubr.f32.mxu0 0.0
      %927 = vmatmul.mubr.f32.gmra.mxu0 %v739
      %v928 = vpop.f32.mrf.mxu0
      %v929 = vadd.f32 %v694, %v928
      %v930 = vpop.f32.mrf.mxu0
      %931 = vmatprep.mubr.f32.mxu0 0.0
      %932 = vmatmul.mubr.f32.gmra.mxu0 %v742
      %v933 = vpop.f32.mrf.mxu0
      %v934 = vadd.f32 %v694, %v933
      %v935 = vpop.f32.mrf.mxu0
      %936 = vmatprep.mubr.f32.mxu0 0.0
      %937 = vmatmul.mubr.f32.gmra.mxu0 %v745
      %v938 = vpop.f32.mrf.mxu0
      %v939 = vadd.f32 %v694, %v938
      %v940 = vpop.f32.mrf.mxu0
      %941 = vmatprep.mubr.f32.mxu0 0.0
      %942 = vmatmul.mubr.f32.gmra.mxu0 %v748
      %v943 = vpop.f32.mrf.mxu0
      %v944 = vadd.f32 %v694, %v943
      %v945 = vpop.f32.mrf.mxu0
      %946 = vmatprep.mubr.f32.mxu0 0.0
      %947 = vmatmul.mubr.f32.gmra.mxu0 %v751
      %v948 = vpop.f32.mrf.mxu0
      %v949 = vadd.f32 %v694, %v948
      %v950 = vpop.f32.mrf.mxu0
      %951 = vmatprep.mubr.f32.mxu0 0.0
      %952 = vmatmul.mubr.f32.gmra.mxu0 %v754
      %v953 = vpop.f32.mrf.mxu0
      %v954 = vadd.f32 %v694, %v953
      %v955 = vpop.f32.mrf.mxu0
      %956 = vmatprep.mubr.f32.mxu0 0.0
      %957 = vmatmul.mubr.f32.gmra.mxu0 %v757
      %v958 = vpop.f32.mrf.mxu0
      %v959 = vadd.f32 %v694, %v958
      %v960 = vpop.f32.mrf.mxu0
      %961 = vmatprep.mubr.f32.mxu0 0.0
      %962 = vmatmul.mubr.f32.gmra.mxu0 %v760
      %v963 = vpop.f32.mrf.mxu0
      %v964 = vadd.f32 %v694, %v963
      %v965 = vpop.f32.mrf.mxu0
      %966 = vmatprep.mubr.f32.mxu0 0.0
      %967 = vmatmul.mubr.f32.gmra.mxu0 %v763
      %v968 = vpop.f32.mrf.mxu0
      %v969 = vadd.f32 %v694, %v968
      %v970 = vpop.f32.mrf.mxu0
      %971 = vmatprep.mubr.f32.mxu0 0.0
      %972 = vmatmul.mubr.f32.gmra.mxu0 %v766
      %v973 = vpop.f32.mrf.mxu0
      %v974 = vadd.f32 %v694, %v973
      %v975 = vpop.f32.mrf.mxu0
      %976 = vmatprep.mubr.f32.mxu0 0.0
      %977 = vmatmul.mubr.f32.gmra.mxu0 %v769
      %v978 = vpop.f32.mrf.mxu0
      %v979 = vadd.f32 %v694, %v978
      %v980 = vpop.f32.mrf.mxu0
      %981 = vmatprep.mubr.f32.mxu0 0.0
      %982 = vmatmul.mubr.f32.gmra.mxu0 %v772
      %v983 = vpop.f32.mrf.mxu0
      %v984 = vadd.f32 %v694, %v983
      %v985 = vpop.f32.mrf.mxu0
      %986 = vmatprep.mubr.f32.mxu0 0.0
      %987 = vmatmul.mubr.f32.gmra.mxu0 %v775
      %v988 = vpop.f32.mrf.mxu0
      %v989 = vadd.f32 %v694, %v988
      %v990 = vpop.f32.mrf.mxu0
      %991 = vmatprep.mubr.f32.mxu0 0.0
      %992 = vmatmul.mubr.f32.gmra.mxu0 %v778
      %v993 = vpop.f32.mrf.mxu0
      %v994 = vadd.f32 %v694, %v993
      %v995 = vpop.f32.mrf.mxu0
      %996 = vmatprep.mubr.f32.mxu0 0.0
      %997 = vmatmul.mubr.f32.gmra.mxu0 %v781
      %v998 = vpop.f32.mrf.mxu0
      %v999 = vadd.f32 %v694, %v998
      %v1000 = vpop.f32.mrf.mxu0
      %1001 = vmatprep.mubr.f32.mxu0 0.0
      %1002 = vmatmul.mubr.f32.gmra.mxu0 %v784
      %v1003 = vpop.f32.mrf.mxu0
      %v1004 = vadd.f32 %v694, %v1003
      %v1005 = vpop.f32.mrf.mxu0
      %1006 = vmatprep.mubr.f32.mxu0 0.0
      %1007 = vmatmul.mubr.f32.gmra.mxu0 %v787
      %v1008 = vpop.f32.mrf.mxu0
      %v1009 = vadd.f32 %v694, %v1008
      %v1010 = vpop.f32.mrf.mxu0
      %1011 = vmatprep.mubr.f32.mxu0 0.0
      %1012 = vmatmul.mubr.f32.gmra.mxu0 %v790
      %v1013 = vpop.f32.mrf.mxu0
      %v1014 = vadd.f32 %v694, %v1013
      %v1015 = vpop.f32.mrf.mxu0
      %1016 = vdwg.mxu0
      %1017 = vst [vmem:[%s4] sm:$0xff] %v859
      %1018 = vst [vmem:[%s4 + $0x8] sm:$0xff] %v864
      %1019 = vst [vmem:[%s4 + $0x10] sm:$0xff] %v869
      %1020 = vst [vmem:[%s4 + $0x18] sm:$0xff] %v874
      %1021 = vst [vmem:[%s4 + $0x20] sm:$0xff] %v879
      %1022 = vst [vmem:[%s4 + $0x28] sm:$0xff] %v884
      %1023 = vst [vmem:[%s4 + $0x30] sm:$0xff] %v889
      %1024 = vst [vmem:[%s4 + $0x38] sm:$0xff] %v894
      %1025 = vst [vmem:[%s4 + $0x40] sm:$0xff] %v899
      %1026 = vst [vmem:[%s4 + $0x48] sm:$0xff] %v904
      %1027 = vst [vmem:[%s4 + $0x50] sm:$0xff] %v909
      %1028 = vst [vmem:[%s4 + $0x58] sm:$0xff] %v914
      %1029 = vst [vmem:[%s4 + $0x60] sm:$0xff] %v919
      %1030 = vst [vmem:[%s4 + $0x68] sm:$0xff] %v924
      %1031 = vst [vmem:[%s4 + $0x70] sm:$0xff] %v929
      %1032 = vst [vmem:[%s4 + $0x78] sm:$0xff] %v934
      %1033 = vst [vmem:[%s4 + $0x80] sm:$0xff] %v939
      %1034 = vst [vmem:[%s4 + $0x88] sm:$0xff] %v944
      %1035 = vst [vmem:[%s4 + $0x90] sm:$0xff] %v949
      %1036 = vst [vmem:[%s4 + $0x98] sm:$0xff] %v954
      %1037 = vst [vmem:[%s4 + $0xa0] sm:$0xff] %v959
      %1038 = vst [vmem:[%s4 + $0xa8] sm:$0xff] %v964
      %1039 = vst [vmem:[%s4 + $0xb0] sm:$0xff] %v969
      %1040 = vst [vmem:[%s4 + $0xb8] sm:$0xff] %v974
      %1041 = vst [vmem:[%s4 + $0xc0] sm:$0xff] %v979
      %1042 = vst [vmem:[%s4 + $0xc8] sm:$0xff] %v984
      %1043 = vst [vmem:[%s4 + $0xd0] sm:$0xff] %v989
      %1044 = vst [vmem:[%s4 + $0xd8] sm:$0xff] %v994
      %1045 = vst [vmem:[%s4 + $0xe0] sm:$0xff] %v999
      %1046 = vst [vmem:[%s4 + $0xe8] sm:$0xff] %v1004
      %1047 = vst [vmem:[%s4 + $0xf0] sm:$0xff] %v1009
      %1048 = vst [vmem:[%s4 + $0xf8] sm:$0xff] %v1014
    $region29: #{gcn_forward_pallas.1} parent=1 // pred_fallthru
      _
    // Predicated region
    $region30: #{gcn_forward_pallas.1} parent=1 // pred_check
      _
    $region31: #{gcn_forward_pallas.1} parent=1 // pred_check_branch
      %1050 = sbr.rel (0) target = $region33
    $region32: #{gcn_forward_pallas.1} parent=1 // pred_region
      _
    $region33: #{gcn_forward_pallas.1} parent=1 // pred_fallthru
      _
    // Predicated region
    $region34: #{gcn_forward_pallas.1} parent=1 // pred_check
      _
    $region35: #{gcn_forward_pallas.1} parent=1 // pred_check_branch
      %1052 = sbr.rel (0) target = $region37
    $region36: #{gcn_forward_pallas.1} parent=1 // pred_region
      _
    $region37: #{gcn_forward_pallas.1} parent=1 // pred_fallthru
      _
    %1053 = vsyncpa [#allocation4], 1

</llo_original>
